<compile_context>
chip_gen: v5e
topology: v5e:2x2
jax: 0.10.0
libtpu: 0.0.40
codegen_flags: <defaults>
</compile_context>

<pallas_src>
import jax
import jax.numpy as jnp
from jax.experimental import pallas as pl
from jax.experimental.pallas import tpu as pltpu

_TARGET_BLOCK_BYTES = 8 * 1024 * 1024   # ~8 MiB per block (in rec. range for v5e/v6e/v7x)
_VMEM_LIMIT_BYTES = 48 * 1024 * 1024    # 2x(in+out) 8 MiB blocks = 32 MiB, headroom on v7x


def _identity_kernel(x_ref, o_ref):
    # Pure element copy of the current tile.
    o_ref[...] = x_ref[...]


def _pick_lane_width(total: int) -> int:
    """Lane-dense last dim (multiple of 128), preferring widths that still
    leave >= 8 rows so large arrays can be tiled and pipelined."""
    for c in (4096, 2048, 1024, 512, 256, 128):
        if total % c == 0 and total // c >= 8:
            return c
    for c in (4096, 2048, 1024, 512, 256, 128):
        if total % c == 0:
            return c
    return 0


def _pick_tile_rows(R: int, C: int, itemsize: int, sublane: int) -> int:
    """Sublane-aligned row-tile near the byte target; prefers divisors of R and
    keeps >= 2 grid steps when possible so both v7x cores get work."""
    tile_r = max(sublane, _TARGET_BLOCK_BYTES // max(1, C * itemsize))
    tile_r = max(sublane, (tile_r // sublane) * sublane)
    tile_r = min(tile_r, R)

    if tile_r >= R:
        # Whole array fits in one block: split into 2 steps when rows allow so
        # the "parallel" grid axis actually feeds both v7x TensorCores.
        if R >= 2 * sublane:
            tile_r = max(sublane, (R // 2 // sublane) * sublane)
        else:
            return R  # full-extent row block is always legal

    # Nudge to a sublane-aligned divisor of R near the target so the last
    # block isn't a masked partial store (only if it doesn't shrink blocks >2x).
    if R % tile_r != 0:
        d = tile_r
        while d >= sublane:
            if R % d == 0:
                if d * 2 >= tile_r:
                    tile_r = d
                break
            d -= sublane
    return tile_r


def _identity_2d(x2: jax.Array) -> jax.Array:
    R, C = x2.shape
    itemsize = jnp.dtype(x2.dtype).itemsize
    # dtype-dependent sublane packing: 8 (f32) / 16 (bf16) / 32 (int8)
    sublane = max(8, 32 // itemsize)
    tile_r = _pick_tile_rows(R, C, itemsize, sublane)
    grid = (pl.cdiv(R, tile_r),)

    return pl.pallas_call(
        _identity_kernel,
        out_shape=jax.ShapeDtypeStruct((R, C), x2.dtype),
        grid_spec=pltpu.PrefetchScalarGridSpec(
            num_scalar_prefetch=0,
            grid=grid,
            in_specs=[pl.BlockSpec((tile_r, C), lambda i: (i, 0))],
            out_specs=pl.BlockSpec((tile_r, C), lambda i: (i, 0)),
        ),
        compiler_params=pltpu.CompilerParams(
            dimension_semantics=("parallel",),
            vmem_limit_bytes=_VMEM_LIMIT_BYTES,
        ),
        cost_estimate=pl.CostEstimate(
            flops=0,
            transcendentals=0,
            bytes_accessed=2 * R * C * itemsize,
        ),
    )(x2)


def _identity_flat_ragged(x1: jax.Array) -> jax.Array:
    """Fallback for element counts not divisible by 128: copy the flat (1, N)
    view in lane-dense chunks (multiple of 128); only the final chunk's tail is
    a masked store. Chunk kept modest because a (1, chunk) block pads to full
    sublane tiles in VMEM."""
    N = x1.shape[1]
    itemsize = jnp.dtype(x1.dtype).itemsize
    chunk = 64 * 1024  # elements; multiple of 128
    if N <= chunk:
        chunk = N  # full-extent last-dim block is always legal
    grid = (pl.cdiv(N, chunk),)

    return pl.pallas_call(
        _identity_kernel,
        out_shape=jax.ShapeDtypeStruct((1, N), x1.dtype),
        grid_spec=pltpu.PrefetchScalarGridSpec(
            num_scalar_prefetch=0,
            grid=grid,
            in_specs=[pl.BlockSpec((1, chunk), lambda i: (0, i))],
            out_specs=pl.BlockSpec((1, chunk), lambda i: (0, i)),
        ),
        compiler_params=pltpu.CompilerParams(
            dimension_semantics=("parallel",),
            vmem_limit_bytes=_VMEM_LIMIT_BYTES,
        ),
        cost_estimate=pl.CostEstimate(
            flops=0,
            transcendentals=0,
            bytes_accessed=2 * N * itemsize,
        ),
    )(x1)


@jax.jit
def identity_pallas(x: jax.Array) -> jax.Array:
    """Identity forward: returns x (bit-exact), routed through a Pallas kernel."""
    orig_shape = x.shape
    total = x.size
    if total == 0:
        return x

    C = _pick_lane_width(total)
    if C == 0:
        # Element count not divisible by 128: lane-dense chunked copy over the
        # flat view (avoids narrow masked stores from a small trailing dim).
        out = _identity_flat_ragged(x.reshape(1, total))
    else:
        out = _identity_2d(x.reshape(total // C, C))
    return out.reshape(orig_shape)


if __name__ == "__main__":
    key = jax.random.PRNGKey(0)
    # Small NCHW input consistent with a conv-style baseline.
    x = jax.random.normal(key, (2, 4, 16, 16), dtype=jnp.float32)

    y = identity_pallas(x)
    y = jax.block_until_ready(y)

    assert y.shape == x.shape
    assert y.dtype == x.dtype
    assert bool(jnp.array_equal(y, x))

    print("KERNEL_OK")
</pallas_src>

<mosaic_0001>
module attributes {stable_mosaic.version = 11 : i64} {
  func.func @_identity_kernel(%arg0: i32, %arg1: memref<8x256xf32, #tpu.memory_space<vmem>>, %arg2: memref<8x256xf32, #tpu.memory_space<vmem>>) attributes {dimension_semantics = [#tpu.dimension_semantics<parallel>], iteration_bounds = array<i64: 1>, scalar_prefetch = 0 : i64, scratch_operands = 0 : i64, tpu.core_type = #tpu.core_type<tc>, window_params = [{transform_indices = @transform_0, window_bounds = array<i64: 8, 256>}, {transform_indices = @transform_1, window_bounds = array<i64: 8, 256>}]} {
    %c0 = arith.constant 0 : index
    %c0_0 = arith.constant 0 : index
    %0 = vector.load %arg1[%c0, %c0_0] : memref<8x256xf32, #tpu.memory_space<vmem>>, vector<8x256xf32>
    %c0_1 = arith.constant 0 : index
    %c0_2 = arith.constant 0 : index
    %1 = vector.load %arg2[%c0_1, %c0_2] : memref<8x256xf32, #tpu.memory_space<vmem>>, vector<8x256xf32>
    tpu.vector_store %arg2[%c0_1, %c0_2], %0 {strides = array<i32>} : memref<8x256xf32, #tpu.memory_space<vmem>>, vector<8x256xf32>,
    return
  }
  func.func @transform_0(%arg0: i32) -> (i32, i32) {
    %c0_i32 = arith.constant 0 : i32
    %c0_i32_0 = arith.constant 0 : i32
    return %arg0, %c0_i32 : i32, i32
  }
  func.func @transform_1(%arg0: i32) -> (i32, i32) {
    %c0_i32 = arith.constant 0 : i32
    %c0_i32_0 = arith.constant 0 : i32
    return %arg0, %c0_i32 : i32, i32
  }
}

</mosaic_0001>

<llo_original>
// kernel: identity_pallas.1
$region0: #{identity_pallas.1}
  #allocation0 [shape = 'u32[]', space=smem, size = 0x4, offset = 0x4, fixed_abs, tag = 'smem constant byte address 0x4 - core index']
  #allocation1 [shape = 'u32[72,128]{1,0:T(1,128)}', space=vmem, size = 0x9000, scoped, tag = 'internal scratch']
  %s0 = inlined_call_operand.vmem [shape: f32[8,256], index: 0, kind: input, shape index: {}]
  %s1 = inlined_call_operand.vmem [shape: f32[8,256], index: 1, kind: output, shape index: {}]
  %s2 = sld [smem:[#allocation0]]
  $region14: #{identity_pallas.1} parent=0
    _
  %s4 = ssub.s32 1, %s2
  %s5 = scalar_select 0, %s4, %s2
  // Predicated region
  $region2: #{identity_pallas.1} parent=0 // pred_check
    _
  $region3: #{identity_pallas.1} parent=0 // pred_check_branch
    %7 = sbr.rel (0) target = $region5
  $region4: #{identity_pallas.1} parent=0 // pred_region
    _
  $region5: #{identity_pallas.1} parent=0 // pred_fallthru
    _
  %v8 = vld [vmem:[%s0] sm:$0xff]
  %v9 = vld [vmem:[%s0 + $0x8] sm:$0xff]
  %10 = vst [vmem:[%s1] sm:$0xff] %v8
  %11 = vst [vmem:[%s1 + $0x8] sm:$0xff] %v9
  // Predicated region
  $region6: #{identity_pallas.1} parent=0 // pred_check
    _
  $region7: #{identity_pallas.1} parent=0 // pred_check_branch
    %13 = sbr.rel (0) target = $region9
  $region8: #{identity_pallas.1} parent=0 // pred_region
    _
  $region9: #{identity_pallas.1} parent=0 // pred_fallthru
    _
  // Predicated region
  $region10: #{identity_pallas.1} parent=0 // pred_check
    _
  $region11: #{identity_pallas.1} parent=0 // pred_check_branch
    %15 = sbr.rel (0) target = $region13
  $region12: #{identity_pallas.1} parent=0 // pred_region
    _
  $region13: #{identity_pallas.1} parent=0 // pred_fallthru
    _

</llo_original>
